<compile_context>
chip_gen: v5e
topology: v5e:2x2
jax: 0.10.0
libtpu: 0.0.40
codegen_flags: <defaults>
</compile_context>

<pallas_src>
import functools

import jax
import jax.numpy as jnp
from jax.experimental import pallas as pl
from jax.experimental.pallas import tpu as pltpu


def _round_up(x, m):
    return ((x + m - 1) // m) * m


def _wce2_kernel(x0_ref, x1_ref, tgt_ref, w_ref, num_ref, den_ref, num_acc, den_acc):
    t = pl.program_id(1)  # inner ("arbitrary") reduction axis

    @pl.when(t == 0)
    def _():
        num_acc[...] = jnp.zeros_like(num_acc)
        den_acc[...] = jnp.zeros_like(den_acc)

    x0 = x0_ref[...]
    x1 = x1_ref[...]
    if x0.dtype != jnp.float32:  # bf16 inputs: cast per-tile in VMEM (hidden under DMA)
        x0 = x0.astype(jnp.float32)
        x1 = x1.astype(jnp.float32)
    tgt = tgt_ref[...]                       # (tr, 128) int32, one sample per lane
    w0 = w_ref[0]                            # class weights, two SMEM scalars
    w1 = w_ref[1]

    # Numerically stable 2-class logsumexp, fully elementwise (1 exp + 1 log).
    m = jnp.maximum(x0, x1)
    mn = jnp.minimum(x0, x1)
    lse = m + jnp.log(1.0 + jnp.exp(mn - m))

    # Target gather / weight lookup as simple selects (no iota / one-hot).
    x_t = jnp.where(tgt == 1, x1, x0)
    wi = jnp.where(tgt == 0, w0, jnp.where(tgt == 1, w1, 0.0))  # padded targets -> 0

    # Accumulate vreg-shaped partial sums (pure VPU adds, no per-step tree reduce).
    contrib = wi * (lse - x_t)
    num_acc[...] += jnp.sum(contrib.reshape(-1, 8, 128), axis=0)
    den_acc[...] += jnp.sum(wi.reshape(-1, 8, 128), axis=0)

    @pl.when(t == pl.num_programs(1) - 1)
    def _():
        num_ref[...] = jnp.sum(num_acc[...]).reshape(1, 1, 1)
        den_ref[...] = jnp.sum(den_acc[...]).reshape(1, 1, 1)


@functools.partial(jax.jit, static_argnames=("tile_rows", "num_parts"))
def weighted_cross_entropy_loss(logits, targets, weights, *, tile_rows=None, num_parts=None):
    """logits: (N, 2) f32/bf16, targets: (N,) int, weights: (2,) float -> scalar f32."""
    n, c = logits.shape
    if c != 2:
        # TODO(synk): general-C path (class-tiled online logsumexp) not implemented.
        raise NotImplementedError("This kernel is specialized for the binary module (C == 2).")

    targets = targets.astype(jnp.int32)
    weights = jnp.asarray(weights, dtype=jnp.float32)
    itemsize = jnp.dtype(logits.dtype).itemsize
    sub_mult = 8 if itemsize >= 4 else (16 if itemsize == 2 else 32)

    # --- VMEM-budget-derived tile size (generation aware) -------------------
    try:
        vmem_cap = pltpu.get_tpu_info().vmem_capacity_bytes
    except Exception:
        vmem_cap = 64 * 1024 * 1024  # conservative default (v7x per-TC VMEM)
    budget = int(0.35 * vmem_cap)
    # Per lane-row (128 samples): 2 logit planes + 1 int32 target plane,
    # double-buffered, plus ~6 live f32 intermediate tiles.
    in_row_bytes = 128 * (2 * itemsize + 4)
    per_row_working = 2 * in_row_bytes + 6 * 128 * 4
    max_tile_rows = max(sub_mult, (budget // per_row_working) // sub_mult * sub_mult)

    rows_needed = max(1, _round_up(n, 128) // 128)
    if tile_rows is None:
        tr = min(max_tile_rows, _round_up(rows_needed, sub_mult))
    else:
        tr = min(max(sub_mult, _round_up(int(tile_rows), sub_mult)), max_tile_rows)

    tiles_needed = -(-rows_needed // tr)
    if num_parts is None:
        p = 2 if tiles_needed >= 2 else 1   # use both TensorCores on v7x; harmless on 1-TC chips
    else:
        p = max(1, int(num_parts))
    t_per_part = -(-tiles_needed // p)
    rows_pad = p * t_per_part * tr
    n_pad = rows_pad * 128

    # --- lane-dense inputs ---------------------------------------------------
    # Pad samples; padded targets get class index 2 (out of range) -> weight 0,
    # so they contribute nothing to either numerator or denominator.
    if n_pad != n:
        logits = jnp.pad(logits, ((0, n_pad - n), (0, 0)))
        targets = jnp.pad(targets, (0, n_pad - n), constant_values=c)
    x0 = logits[:, 0].reshape(rows_pad, 128)
    x1 = logits[:, 1].reshape(rows_pad, 128)
    tgt = targets.reshape(rows_pad, 128)

    grid = (p, t_per_part)
    vmem_limit = int(min(max(per_row_working * tr + (2 << 20), 8 << 20), vmem_cap // 2))

    cost = pl.CostEstimate(
        flops=14 * n_pad,
        transcendentals=2 * n_pad,
        bytes_accessed=n_pad * (2 * itemsize + 4) + 2 * 4 + p * 8,
    )

    def row_map(pi, ti):
        return (pi * t_per_part + ti, 0)

    num_out, den_out = pl.pallas_call(
        _wce2_kernel,
        out_shape=(
            jax.ShapeDtypeStruct((p, 1, 1), jnp.float32),
            jax.ShapeDtypeStruct((p, 1, 1), jnp.float32),
        ),
        grid_spec=pltpu.PrefetchScalarGridSpec(
            num_scalar_prefetch=0,
            grid=grid,
            in_specs=[
                pl.BlockSpec((tr, 128), row_map),                       # class-0 logits
                pl.BlockSpec((tr, 128), row_map),                       # class-1 logits
                pl.BlockSpec((tr, 128), row_map),                       # targets
                pl.BlockSpec(memory_space=pltpu.MemorySpace.SMEM),      # class weights (2 scalars)
            ],
            out_specs=[
                pl.BlockSpec((1, 1, 1), lambda pi, ti: (pi, 0, 0)),     # per-part num
                pl.BlockSpec((1, 1, 1), lambda pi, ti: (pi, 0, 0)),     # per-part den
            ],
            scratch_shapes=[
                pltpu.VMEM((8, 128), jnp.float32),                      # num partials
                pltpu.VMEM((8, 128), jnp.float32),                      # den partials
            ],
        ),
        compiler_params=pltpu.CompilerParams(
            dimension_semantics=("parallel", "arbitrary"),
            vmem_limit_bytes=vmem_limit,
        ),
        cost_estimate=cost,
    )(x0, x1, tgt, weights)

    return jnp.sum(num_out) / jnp.sum(den_out)


def _reference(logits, targets, weights):
    # pure-JAX reference mirroring F.cross_entropy(..., weight=weights)
    logp = jax.nn.log_softmax(logits.astype(jnp.float32), axis=-1)
    nll = -jnp.take_along_axis(logp, targets[:, None].astype(jnp.int32), axis=-1)[:, 0]
    wi = weights.astype(jnp.float32)[targets]
    return jnp.sum(wi * nll) / jnp.sum(wi)


if __name__ == "__main__":
    key = jax.random.PRNGKey(0)
    class_weights = jnp.array([1.0, 2.0], dtype=jnp.float32)  # from WeightedCrossEntropyLoss.__init__

    # Case 1: small shape matching the module (binary classification).
    k1, k2 = jax.random.split(key)
    N, C = 8, 2
    logits = jax.random.normal(k1, (N, C), dtype=jnp.float32)
    targets = jax.random.randint(k2, (N,), 0, C, dtype=jnp.int32)
    loss = jax.block_until_ready(weighted_cross_entropy_loss(logits, targets, class_weights))
    ref = _reference(logits, targets, class_weights)
    assert jnp.allclose(loss, ref, rtol=1e-5, atol=1e-5), (loss, ref)

    # Case 2: exercises multi-tile accumulation, the 2-part (dual-TensorCore)
    # grid axis, and sample padding.
    k3, k4 = jax.random.split(k2)
    N2 = 6000
    logits2 = jax.random.normal(k3, (N2, C), dtype=jnp.float32)
    targets2 = jax.random.randint(k4, (N2,), 0, C, dtype=jnp.int32)
    loss2 = jax.block_until_ready(
        weighted_cross_entropy_loss(logits2, targets2, class_weights, tile_rows=8, num_parts=2))
    ref2 = _reference(logits2, targets2, class_weights)
    assert jnp.allclose(loss2, ref2, rtol=1e-4, atol=1e-5), (loss2, ref2)

    # Case 3: bf16 logits (cast happens per-tile inside the kernel).
    logits3 = logits2.astype(jnp.bfloat16)
    loss3 = jax.block_until_ready(weighted_cross_entropy_loss(logits3, targets2, class_weights))
    ref3 = _reference(logits3, targets2, class_weights)
    assert jnp.allclose(loss3, ref3, rtol=1e-3, atol=1e-3), (loss3, ref3)

    print("KERNEL_OK")
</pallas_src>

<mosaic_0001>
module attributes {stable_mosaic.version = 11 : i64} {
  func.func @_wce2_kernel(%arg0: i32, %arg1: i32, %arg2: memref<8x128xf32, #tpu.memory_space<vmem>>, %arg3: memref<8x128xf32, #tpu.memory_space<vmem>>, %arg4: memref<8x128xi32, #tpu.memory_space<vmem>>, %arg5: memref<2xf32, #tpu.memory_space<smem>>, %arg6: memref<1x1x1xf32, #tpu.memory_space<vmem>>, %arg7: memref<1x1x1xf32, #tpu.memory_space<vmem>>, %arg8: memref<8x128xf32, #tpu.memory_space<vmem>>, %arg9: memref<8x128xf32, #tpu.memory_space<vmem>>) attributes {dimension_semantics = [#tpu.dimension_semantics<parallel>, #tpu.dimension_semantics<arbitrary>], iteration_bounds = array<i64: 1, 1>, scalar_prefetch = 0 : i64, scratch_operands = 2 : i64, tpu.core_type = #tpu.core_type<tc>, window_params = [{transform_indices = @transform_0, window_bounds = array<i64: 8, 128>}, {transform_indices = @transform_1, window_bounds = array<i64: 8, 128>}, {transform_indices = @transform_2, window_bounds = array<i64: 8, 128>}, {transform_indices = @transform_3, window_bounds = array<i64: 2>}, {transform_indices = @transform_4, window_bounds = array<i64: 1, 1, 1>}, {transform_indices = @transform_5, window_bounds = array<i64: 1, 1, 1>}]} {
    %c0_i32 = arith.constant 0 : i32
    %0 = arith.cmpi eq, %arg1, %c0_i32 : i32
    %1 = arith.extui %0 : i1 to i32
    %c0_i32_0 = arith.constant 0 : i32
    %2 = arith.cmpi ne, %1, %c0_i32_0 : i32
    scf.if %2 {
      %cst_22 = arith.constant 0.000000e+00 : f32
      %43 = vector.broadcast %cst_22 : f32 to vector<8x128xf32>
      %c0_23 = arith.constant 0 : index
      %c0_24 = arith.constant 0 : index
      %44 = vector.load %arg8[%c0_23, %c0_24] : memref<8x128xf32, #tpu.memory_space<vmem>>, vector<8x128xf32>
      tpu.vector_store %arg8[%c0_23, %c0_24], %43 {strides = array<i32>} : memref<8x128xf32, #tpu.memory_space<vmem>>, vector<8x128xf32>,
      %cst_25 = arith.constant 0.000000e+00 : f32
      %45 = vector.broadcast %cst_25 : f32 to vector<8x128xf32>
      %c0_26 = arith.constant 0 : index
      %c0_27 = arith.constant 0 : index
      %46 = vector.load %arg9[%c0_26, %c0_27] : memref<8x128xf32, #tpu.memory_space<vmem>>, vector<8x128xf32>
      tpu.vector_store %arg9[%c0_26, %c0_27], %45 {strides = array<i32>} : memref<8x128xf32, #tpu.memory_space<vmem>>, vector<8x128xf32>,
    } else {
    }
    %c0 = arith.constant 0 : index
    %c0_1 = arith.constant 0 : index
    %3 = vector.load %arg2[%c0, %c0_1] : memref<8x128xf32, #tpu.memory_space<vmem>>, vector<8x128xf32>
    %c0_2 = arith.constant 0 : index
    %c0_3 = arith.constant 0 : index
    %4 = vector.load %arg3[%c0_2, %c0_3] : memref<8x128xf32, #tpu.memory_space<vmem>>, vector<8x128xf32>
    %c0_4 = arith.constant 0 : index
    %c0_5 = arith.constant 0 : index
    %5 = vector.load %arg4[%c0_4, %c0_5] : memref<8x128xi32, #tpu.memory_space<vmem>>, vector<8x128xi32>
    %c0_6 = arith.constant 0 : index
    %6 = memref.load %arg5[%c0_6] : memref<2xf32, #tpu.memory_space<smem>>
    %c1 = arith.constant 1 : index
    %7 = memref.load %arg5[%c1] : memref<2xf32, #tpu.memory_space<smem>>
    %8 = arith.maximumf %3, %4 : vector<8x128xf32>
    %9 = arith.minimumf %3, %4 : vector<8x128xf32>
    %10 = arith.subf %9, %8 : vector<8x128xf32>
    %11 = math.exp %10 : vector<8x128xf32>
    %cst = arith.constant 1.000000e+00 : f32
    %12 = vector.broadcast %cst : f32 to vector<8x128xf32>
    %13 = arith.addf %12, %11 : vector<8x128xf32>
    %14 = math.log %13 : vector<8x128xf32>
    %15 = arith.addf %8, %14 : vector<8x128xf32>
    %c1_i32 = arith.constant 1 : i32
    %16 = vector.broadcast %c1_i32 : i32 to vector<8x128xi32>
    %17 = arith.cmpi eq, %5, %16 : vector<8x128xi32>
    %18 = arith.select %17, %4, %3 : vector<8x128xi1>, vector<8x128xf32>
    %c0_i32_7 = arith.constant 0 : i32
    %19 = vector.broadcast %c0_i32_7 : i32 to vector<8x128xi32>
    %20 = arith.cmpi eq, %5, %19 : vector<8x128xi32>
    %c1_i32_8 = arith.constant 1 : i32
    %21 = vector.broadcast %c1_i32_8 : i32 to vector<8x128xi32>
    %22 = arith.cmpi eq, %5, %21 : vector<8x128xi32>
    %cst_9 = arith.constant 0.000000e+00 : f32
    %23 = vector.broadcast %7 : f32 to vector<8x128xf32>
    %24 = vector.broadcast %cst_9 : f32 to vector<8x128xf32>
    %25 = arith.select %22, %23, %24 : vector<8x128xi1>, vector<8x128xf32>
    %26 = vector.broadcast %6 : f32 to vector<8x128xf32>
    %27 = arith.select %20, %26, %25 : vector<8x128xi1>, vector<8x128xf32>
    %28 = arith.subf %15, %18 : vector<8x128xf32>
    %29 = arith.mulf %27, %28 : vector<8x128xf32>
    %c0_10 = arith.constant 0 : index
    %c0_11 = arith.constant 0 : index
    %30 = vector.load %arg8[%c0_10, %c0_11] : memref<8x128xf32, #tpu.memory_space<vmem>>, vector<8x128xf32>
    %31 = vector.shape_cast %29 : vector<8x128xf32> to vector<1x8x128xf32>
    %cst_12 = arith.constant dense<0.000000e+00> : vector<8x128xf32>
    %32 = vector.multi_reduction <add>, %31, %cst_12 [0] : vector<1x8x128xf32> to vector<8x128xf32>
    %33 = arith.addf %30, %32 : vector<8x128xf32>
    %c0_13 = arith.constant 0 : index
    %c0_14 = arith.constant 0 : index
    %34 = vector.load %arg8[%c0_13, %c0_14] : memref<8x128xf32, #tpu.memory_space<vmem>>, vector<8x128xf32>
    tpu.vector_store %arg8[%c0_13, %c0_14], %33 {strides = array<i32>} : memref<8x128xf32, #tpu.memory_space<vmem>>, vector<8x128xf32>,
    %c0_15 = arith.constant 0 : index
    %c0_16 = arith.constant 0 : index
    %35 = vector.load %arg9[%c0_15, %c0_16] : memref<8x128xf32, #tpu.memory_space<vmem>>, vector<8x128xf32>
    %36 = vector.shape_cast %27 : vector<8x128xf32> to vector<1x8x128xf32>
    %cst_17 = arith.constant dense<0.000000e+00> : vector<8x128xf32>
    %37 = vector.multi_reduction <add>, %36, %cst_17 [0] : vector<1x8x128xf32> to vector<8x128xf32>
    %38 = arith.addf %35, %37 : vector<8x128xf32>
    %c0_18 = arith.constant 0 : index
    %c0_19 = arith.constant 0 : index
    %39 = vector.load %arg9[%c0_18, %c0_19] : memref<8x128xf32, #tpu.memory_space<vmem>>, vector<8x128xf32>
    tpu.vector_store %arg9[%c0_18, %c0_19], %38 {strides = array<i32>} : memref<8x128xf32, #tpu.memory_space<vmem>>, vector<8x128xf32>,
    %c0_i32_20 = arith.constant 0 : i32
    %40 = arith.cmpi eq, %arg1, %c0_i32_20 : i32
    %41 = arith.extui %40 : i1 to i32
    %c0_i32_21 = arith.constant 0 : i32
    %42 = arith.cmpi ne, %41, %c0_i32_21 : i32
    scf.if %42 {
      %c0_22 = arith.constant 0 : index
      %c0_23 = arith.constant 0 : index
      %43 = vector.load %arg8[%c0_22, %c0_23] : memref<8x128xf32, #tpu.memory_space<vmem>>, vector<8x128xf32>
      %44 = vector.shape_cast %43 : vector<8x128xf32> to vector<1x8x128xf32>
      %cst_24 = arith.constant dense<0.000000e+00> : vector<1xf32>
      %45 = vector.multi_reduction <add>, %44, %cst_24 [1, 2] : vector<1x8x128xf32> to vector<1xf32>
      %46 = vector.shape_cast %45 : vector<1xf32> to vector<1x1x1xf32>
      %47 = vector.extract %46[0, 0, 0] : f32 from vector<1x1x1xf32>
      %48 = vector.broadcast %47 : f32 to vector<1x1x1xf32>
      %c0_25 = arith.constant 0 : index
      %c0_26 = arith.constant 0 : index
      %c0_27 = arith.constant 0 : index
      %49 = vector.load %arg6[%c0_25, %c0_26, %c0_27] : memref<1x1x1xf32, #tpu.memory_space<vmem>>, vector<1x1x1xf32>
      tpu.vector_store %arg6[%c0_25, %c0_26, %c0_27], %48 {strides = array<i32>} : memref<1x1x1xf32, #tpu.memory_space<vmem>>, vector<1x1x1xf32>,
      %c0_28 = arith.constant 0 : index
      %c0_29 = arith.constant 0 : index
      %50 = vector.load %arg9[%c0_28, %c0_29] : memref<8x128xf32, #tpu.memory_space<vmem>>, vector<8x128xf32>
      %51 = vector.shape_cast %50 : vector<8x128xf32> to vector<1x8x128xf32>
      %cst_30 = arith.constant dense<0.000000e+00> : vector<1xf32>
      %52 = vector.multi_reduction <add>, %51, %cst_30 [1, 2] : vector<1x8x128xf32> to vector<1xf32>
      %53 = vector.shape_cast %52 : vector<1xf32> to vector<1x1x1xf32>
      %54 = vector.extract %53[0, 0, 0] : f32 from vector<1x1x1xf32>
      %55 = vector.broadcast %54 : f32 to vector<1x1x1xf32>
      %c0_31 = arith.constant 0 : index
      %c0_32 = arith.constant 0 : index
      %c0_33 = arith.constant 0 : index
      %56 = vector.load %arg7[%c0_31, %c0_32, %c0_33] : memref<1x1x1xf32, #tpu.memory_space<vmem>>, vector<1x1x1xf32>
      tpu.vector_store %arg7[%c0_31, %c0_32, %c0_33], %55 {strides = array<i32>} : memref<1x1x1xf32, #tpu.memory_space<vmem>>, vector<1x1x1xf32>,
    } else {
    }
    return
  }
  func.func @transform_0(%arg0: i32, %arg1: i32) -> (i32, i32) {
    %c1_i32 = arith.constant 1 : i32
    %0 = arith.muli %arg0, %c1_i32 : i32
    %1 = arith.addi %0, %arg1 : i32
    %c0_i32 = arith.constant 0 : i32
    %c0_i32_0 = arith.constant 0 : i32
    return %1, %c0_i32 : i32, i32
  }
  func.func @transform_1(%arg0: i32, %arg1: i32) -> (i32, i32) {
    %c1_i32 = arith.constant 1 : i32
    %0 = arith.muli %arg0, %c1_i32 : i32
    %1 = arith.addi %0, %arg1 : i32
    %c0_i32 = arith.constant 0 : i32
    %c0_i32_0 = arith.constant 0 : i32
    return %1, %c0_i32 : i32, i32
  }
  func.func @transform_2(%arg0: i32, %arg1: i32) -> (i32, i32) {
    %c1_i32 = arith.constant 1 : i32
    %0 = arith.muli %arg0, %c1_i32 : i32
    %1 = arith.addi %0, %arg1 : i32
    %c0_i32 = arith.constant 0 : i32
    %c0_i32_0 = arith.constant 0 : i32
    return %1, %c0_i32 : i32, i32
  }
  func.func @transform_3(%arg0: i32, %arg1: i32) -> i32 {
    %c0_i32 = arith.constant 0 : i32
    %c0_i32_0 = arith.constant 0 : i32
    return %c0_i32 : i32
  }
  func.func @transform_4(%arg0: i32, %arg1: i32) -> (i32, i32, i32) {
    %c0_i32 = arith.constant 0 : i32
    %c0_i32_0 = arith.constant 0 : i32
    %c0_i32_1 = arith.constant 0 : i32
    return %arg0, %c0_i32, %c0_i32_0 : i32, i32, i32
  }
  func.func @transform_5(%arg0: i32, %arg1: i32) -> (i32, i32, i32) {
    %c0_i32 = arith.constant 0 : i32
    %c0_i32_0 = arith.constant 0 : i32
    %c0_i32_1 = arith.constant 0 : i32
    return %arg0, %c0_i32, %c0_i32_0 : i32, i32, i32
  }
}

</mosaic_0001>

<llo_original>
// kernel: weighted_cross_entropy_loss.1
$region0: #{weighted_cross_entropy_loss.1}
  #allocation0 [shape = 'u32[]', space=smem, size = 0x4, offset = 0x4, fixed_abs, tag = 'smem constant byte address 0x4 - core index']
  #allocation1 [shape = 'u32[72,128]{1,0:T(1,128)}', space=vmem, size = 0x9000, scoped, tag = 'internal scratch']
  #allocation2 [shape = 'f32[8,128]{1,0:T(8,128)}', space=vmem, size = 0x1000, scoped, tag = 'scratch operand']
  #allocation3 [shape = 'f32[8,128]{1,0:T(8,128)}', space=vmem, size = 0x1000, scoped, tag = 'scratch operand']
  %s0 = inlined_call_operand.vmem [shape: f32[8,128], index: 0, kind: input, shape index: {}]
  %s1 = inlined_call_operand.vmem [shape: f32[8,128], index: 1, kind: input, shape index: {}]
  %s2 = inlined_call_operand.vmem [shape: s32[8,128], index: 2, kind: input, shape index: {}]
  %s3 = inlined_call_operand.vmem [shape: f32[2], index: 3, kind: input, shape index: {}]
  %s4 = inlined_call_operand.hbm [shape: f32[1,1,1], index: 4, kind: output, shape index: {0}]
  %s5 = inlined_call_operand.hbm [shape: f32[1,1,1], index: 5, kind: output, shape index: {1}]
  %6 = xla_tuple %s4, %s5
  %s7 = sld [smem:[#allocation0]]
  $region46: #{weighted_cross_entropy_loss.1} parent=0
    _
  %s9 = ssub.s32 1, %s7
  %s10 = scalar_select 0, %s9, %s7
  $region1: #{weighted_cross_entropy_loss.1} parent=0
    #allocation4 [shape = 'u8[512]{0}', space=smem, size = 0x200, scoped, tag = 'input window, operand 3, single buffered']
    #allocation5 [shape = 's32[1]{0}', space=sflag, size = 0x4, scoped, tag = 'scoped memory for weighted_cross_entropy_loss.1']
    #allocation6 [shape = 's32[1]{0}', space=sflag, size = 0x4, scoped, tag = 'scoped memory for weighted_cross_entropy_loss.1']
    #allocation7 [shape = 'u8[512]{0}', space=vmem, size = 0x400, scoped, tag = 'output window, operand 0, single buffered']
    #allocation8 [shape = 'u8[512]{0}', space=vmem, size = 0x400, scoped, tag = 'output window, operand 1, single buffered']
    #allocation9 [shape = 's32[1]{0}', space=sflag, size = 0x4, scoped, tag = 'scoped memory for weighted_cross_entropy_loss.1']
    %11 = vsyncpa [#allocation6], 0
    %12 = vsyncpa [#allocation5], 0
    %13 = vsyncpa [#allocation9], 0
    // Predicated region
    $region2: #{weighted_cross_entropy_loss.1} parent=1 // pred_check
      _
    $region3: #{weighted_cross_entropy_loss.1} parent=1 // pred_check_branch
      %15 = sbr.rel (0) target = $region5
    $region4: #{weighted_cross_entropy_loss.1} parent=1 // pred_region
      %s16 = sadd.s32 0, 0
      %p17 = scmp.lt.s32.totalorder %s16, 0
      %s18 = scalar_select %p17, %s16, 0
      %s19 = smul.addr %s18, 8
      %s20 = scalar_lea.vmem %s0, %s19
      %s21 = sadd.s32 0, 0
    $region5: #{weighted_cross_entropy_loss.1} parent=1 // pred_fallthru
      _
    // Predicated region
    $region6: #{weighted_cross_entropy_loss.1} parent=1 // pred_check
      _
    $region7: #{weighted_cross_entropy_loss.1} parent=1 // pred_check_branch
      %23 = sbr.rel (0) target = $region9
    $region8: #{weighted_cross_entropy_loss.1} parent=1 // pred_region
      %s24 = sadd.s32 0, 0
      %p25 = scmp.lt.s32.totalorder %s24, 0
      %s26 = scalar_select %p25, %s24, 0
      %s27 = smul.addr %s26, 8
      %s28 = scalar_lea.vmem %s1, %s27
      %s29 = sadd.s32 0, 0
    $region9: #{weighted_cross_entropy_loss.1} parent=1 // pred_fallthru
      _
    // Predicated region
    $region10: #{weighted_cross_entropy_loss.1} parent=1 // pred_check
      _
    $region11: #{weighted_cross_entropy_loss.1} parent=1 // pred_check_branch
      %31 = sbr.rel (0) target = $region13
    $region12: #{weighted_cross_entropy_loss.1} parent=1 // pred_region
      %s32 = sadd.s32 0, 0
      %p33 = scmp.lt.s32.totalorder %s32, 0
      %s34 = scalar_select %p33, %s32, 0
      %s35 = smul.addr %s34, 8
      %s36 = scalar_lea.vmem %s2, %s35
      %s37 = sadd.s32 0, 0
    $region13: #{weighted_cross_entropy_loss.1} parent=1 // pred_fallthru
      _
    // Predicated region
    $region14: #{weighted_cross_entropy_loss.1} parent=1 // pred_check
      _
    $region15: #{weighted_cross_entropy_loss.1} parent=1 // pred_check_branch
      %39 = sbr.rel (0) target = $region17
    $region16: #{weighted_cross_entropy_loss.1} parent=1 // pred_region
      %41 = vsyncadd [#allocation6], 0
      %s43 = sshll.u32 %s3, 4
      %s44 = int_to_ptr.vmem [resolvable:$true] %s43
      %46 = dma.vmem_to_smem %s44, 16, [#allocation4], [#allocation6]
    $region17: #{weighted_cross_entropy_loss.1} parent=1 // pred_fallthru
      _
    // Predicated region
    $region18: #{weighted_cross_entropy_loss.1} parent=1 // pred_check
      _
    $region19: #{weighted_cross_entropy_loss.1} parent=1 // pred_check_branch
      %48 = sbr.rel (0) target = $region21
    $region20: #{weighted_cross_entropy_loss.1} parent=1 // pred_region
      %50 = dma.done [#allocation6], 16
    $region21: #{weighted_cross_entropy_loss.1} parent=1 // pred_fallthru
      _
    %51 = sfence
    %s52 = sadd.s32 0, 0
    %p53 = scmp.lt.s32.totalorder %s52, 0
    %s54 = scalar_select %p53, %s52, 0
    %s55 = smul.addr %s54, 8
    %s56 = scalar_lea.vmem %s0, %s55
    %s57 = sadd.s32 0, 0
    %p58 = scmp.lt.s32.totalorder %s57, 0
    %s59 = scalar_select %p58, %s57, 0
    %s60 = smul.addr %s59, 8
    %s61 = scalar_lea.vmem %s1, %s60
    %s62 = sadd.s32 0, 0
    %p63 = scmp.lt.s32.totalorder %s62, 0
    %s64 = scalar_select %p63, %s62, 0
    %s65 = smul.addr %s64, 8
    %s66 = scalar_lea.vmem %s2, %s65
    %s67 = sadd.s32 0, 0
    %p68 = scmp.lt.s32.totalorder %s67, 0
    %s69 = scalar_select %p68, %s67, 0
    %s70 = smul.addr %s69, 8
    %s71 = scalar_lea.vmem %s0, %s70
    %s72 = sadd.s32 0, 0
    %s73 = sadd.s32 0, 0
    %p74 = scmp.lt.s32.totalorder %s73, 0
    %s75 = scalar_select %p74, %s73, 0
    %s76 = smul.addr %s75, 8
    %s77 = scalar_lea.vmem %s1, %s76
    %s78 = sadd.s32 0, 0
    %s79 = sadd.s32 0, 0
    %p80 = scmp.lt.s32.totalorder %s79, 0
    %s81 = scalar_select %p80, %s79, 0
    %s82 = smul.addr %s81, 8
    %s83 = scalar_lea.vmem %s2, %s82
    %s84 = sadd.s32 0, 0
    %p85 = scmp.eq.s32.totalorder 0, 0
    // Predicated region
    $region22: #{weighted_cross_entropy_loss.1} parent=1 // pred_check
      %p86 = pneg %p85
    $region23: #{weighted_cross_entropy_loss.1} parent=1 // pred_check_branch
      %88 = sbr.rel (%p86) target = $region25
    $region24: #{weighted_cross_entropy_loss.1} parent=1 // pred_region
      %89 = vst [vmem:[#allocation2] sm:$0xff] 0.0
      %90 = vst [vmem:[#allocation3] sm:$0xff] 0.0
    $region25: #{weighted_cross_entropy_loss.1} parent=1 // pred_fallthru
      _
    %v91 = vld [vmem:[%s71] sm:$0xff]
    %v92 = vld [vmem:[%s77] sm:$0xff]
    %v93 = vld [vmem:[%s83] sm:$0xff]
    %s94 = sld [smem:[#allocation4]]
    %s95 = sld [smem:[#allocation4 + $0x1]]
    %v96 = vmax.f32 %v91, %v92
    %v97 = vmin.f32 %v91, %v92
    %v98 = vsub.f32 %v97, %v96
    %v99 = vmul.f32 %v98, 1.442695
    %v100 = vpow.pop %v99
    %v101 = vadd.f32 %v100, 1.0
    %v102 = vlog2.pop %v101
    %v103 = vmul.f32 %v102, 0.6931472
    %v104 = vadd.f32 %v96, %v103
    %vm105 = vcmp.eq.s32.totalorder %v93, 1
    %v106 = vsel %vm105, %v92, %v91
    %vm107 = vcmp.eq.s32.totalorder %v93, 0
    %v108 = vstv %s95
    %v109 = vsel %vm105, %v108, 0.0
    %v110 = vstv %s94
    %v111 = vsel %vm107, %v110, %v109
    %v112 = vsub.f32 %v104, %v106
    %v113 = vmul.f32 %v111, %v112
    %v114 = vld [vmem:[#allocation2] sm:$0xff]
    %v115 = vadd.f32 %v113, 0.0
    %v116 = vadd.f32 %v114, %v115
    %117 = vst [vmem:[#allocation2] sm:$0xff] %v116
    %v118 = vld [vmem:[#allocation3] sm:$0xff]
    %v119 = vadd.f32 %v111, 0.0
    %v120 = vadd.f32 %v118, %v119
    %121 = vst [vmem:[#allocation3] sm:$0xff] %v120
    // Predicated region
    $region26: #{weighted_cross_entropy_loss.1} parent=1 // pred_check
      %p122 = pneg %p85
    $region27: #{weighted_cross_entropy_loss.1} parent=1 // pred_check_branch
      %124 = sbr.rel (%p122) target = $region29
    $region28: #{weighted_cross_entropy_loss.1} parent=1 // pred_region
      %v125 = vld [vmem:[#allocation2] sm:$0xff]
      %126 = vadd.xlane.f32.xlu0 %v125
      %v127 = vpop.xlane.xlu0 %126
      %v128 = vrot.slane %v127, 4
      %v129 = vadd.f32 %v127, %v128
      %v130 = vrot.slane %v129, 2
      %v131 = vadd.f32 %v129, %v130
      %v132 = vrot.slane %v131, 1
      %v133 = vadd.f32 %v131, %v132
      %s134 = vtos %v133
      %v135 = vstv %s134
      %vm136 = vcmask 0
      %137 = vst.msk [vmem:[#allocation7] sm:$0x1] %vm136, %v135
      %v138 = vld [vmem:[#allocation3] sm:$0xff]
      %139 = vadd.xlane.f32.xlu0 %v138
      %v140 = vpop.xlane.xlu0 %139
      %v141 = vrot.slane %v140, 4
      %v142 = vadd.f32 %v140, %v141
      %v143 = vrot.slane %v142, 2
      %v144 = vadd.f32 %v142, %v143
      %v145 = vrot.slane %v144, 1
      %v146 = vadd.f32 %v144, %v145
      %s147 = vtos %v146
      %v148 = vstv %s147
      %149 = vst.msk [vmem:[#allocation8] sm:$0x1] %vm136, %v148
    $region29: #{weighted_cross_entropy_loss.1} parent=1 // pred_fallthru
      _
    // Predicated region
    $region30: #{weighted_cross_entropy_loss.1} parent=1 // pred_check
      _
    $region31: #{weighted_cross_entropy_loss.1} parent=1 // pred_check_branch
      %151 = sbr.rel (0) target = $region33
    $region32: #{weighted_cross_entropy_loss.1} parent=1 // pred_region
      %153 = vsyncadd [#allocation5], 0
      %s155 = sshll.u32 [#allocation7], 4
      %s156 = int_to_ptr.vmem [resolvable:$true] %s155
      %s157 = sshll.u32 %s4, 4
      %s158 = int_to_ptr.hbm [resolvable:$true] %s157
      %160 = dma.vmem_to_hbm [thread:$0]  %s156, 16, %s158, [#allocation5]
    $region33: #{weighted_cross_entropy_loss.1} parent=1 // pred_fallthru
      _
    // Predicated region
    $region34: #{weighted_cross_entropy_loss.1} parent=1 // pred_check
      _
    $region35: #{weighted_cross_entropy_loss.1} parent=1 // pred_check_branch
      %162 = sbr.rel (0) target = $region37
    $region36: #{weighted_cross_entropy_loss.1} parent=1 // pred_region
      %164 = vsyncadd [#allocation9], 0
      %s166 = sshll.u32 [#allocation8], 4
      %s167 = int_to_ptr.vmem [resolvable:$true] %s166
      %s168 = sshll.u32 %s5, 4
      %s169 = int_to_ptr.hbm [resolvable:$true] %s168
      %171 = dma.vmem_to_hbm [thread:$0]  %s167, 16, %s169, [#allocation9]
    $region37: #{weighted_cross_entropy_loss.1} parent=1 // pred_fallthru
      _
    // Predicated region
    $region38: #{weighted_cross_entropy_loss.1} parent=1 // pred_check
      _
    $region39: #{weighted_cross_entropy_loss.1} parent=1 // pred_check_branch
      %173 = sbr.rel (0) target = $region41
    $region40: #{weighted_cross_entropy_loss.1} parent=1 // pred_region
      %175 = dma.done [#allocation5], 16
    $region41: #{weighted_cross_entropy_loss.1} parent=1 // pred_fallthru
      _
    // Predicated region
    $region42: #{weighted_cross_entropy_loss.1} parent=1 // pred_check
      _
    $region43: #{weighted_cross_entropy_loss.1} parent=1 // pred_check_branch
      %177 = sbr.rel (0) target = $region45
    $region44: #{weighted_cross_entropy_loss.1} parent=1 // pred_region
      %179 = dma.done [#allocation9], 16
    $region45: #{weighted_cross_entropy_loss.1} parent=1 // pred_fallthru
      _
    %180 = vsyncpa [#allocation5], 1
    %181 = vsyncpa [#allocation9], 1
    %182 = vsyncpa [#allocation6], 1

</llo_original>
